<compile_context>
chip_gen: v7x
topology: tpu7x:2x2x1
jax: 0.10.0
libtpu: 0.0.40
codegen_flags: <defaults>
</compile_context>

<pallas_src>
import jax
import jax.numpy as jnp
from jax.experimental import pallas as pl
from jax.experimental.pallas import tpu as pltpu


def mf_kernel(uid_ref, iid_ref, utab_t_ref, itab_t_ref, out_ref):
    """One batch tile: MXU one-hot gather + sublane reduce, lane-dense store.

    uid_ref, iid_ref : VMEM (1, TILE_B) int32  -- per-tile indices (lane axis)
    utab_t_ref       : VMEM (F, NU) float32    -- transposed user factor table
    itab_t_ref       : VMEM (F, NI) float32    -- transposed item factor table
    out_ref          : VMEM (1, TILE_B) f32    -- lane-dense output tile
    """
    nu = utab_t_ref.shape[1]
    ni = itab_t_ref.shape[1]
    tile_b = out_ref.shape[1]

    uid = uid_ref[...]  # (1, TILE_B)
    iid = iid_ref[...]  # (1, TILE_B)

    # One-hot selection masks; keep in f32 so the gather matmul is exact.
    u_rows = jax.lax.broadcasted_iota(jnp.int32, (nu, tile_b), 0)
    i_rows = jax.lax.broadcasted_iota(jnp.int32, (ni, tile_b), 0)
    u_onehot = (u_rows == uid).astype(jnp.float32)  # (NU, TILE_B)
    i_onehot = (i_rows == iid).astype(jnp.float32)  # (NI, TILE_B)

    # MXU gathers: (F, N) @ (N, TILE_B) -> (F, TILE_B), batch on the lane axis.
    u_emb = jnp.dot(utab_t_ref[...], u_onehot, preferred_element_type=jnp.float32)
    i_emb = jnp.dot(itab_t_ref[...], i_onehot, preferred_element_type=jnp.float32)

    # Elementwise product + reduce over the factor (sublane) axis -> (1, TILE_B).
    out_ref[...] = jnp.sum(u_emb * i_emb, axis=0, keepdims=True)


def matrix_factorization_forward(user, item, user_factors, item_factors,
                                 *, tile_b=256):
    """user, item: int index vectors of shape (B,). Returns (B,) float32."""
    B = user.shape[0]
    NU, F = user_factors.shape
    NI, F2 = item_factors.shape
    assert F == F2

    # Tile must be a multiple of 128 for unmasked lane-dense output stores.
    # Shrink it for tiny batches so we do not pad/compute extra work.
    b128 = ((B + 127) // 128) * 128
    tile_b = max(128, min(((tile_b + 127) // 128) * 128, b128))
    b_pad = ((B + tile_b - 1) // tile_b) * tile_b
    n_tiles = b_pad // tile_b

    # Vectorized clamp (hoisted out of the kernel); pad with index 0, sliced
    # off below.  Indices are laid out (1, b_pad) so each tile is lane-dense.
    uid = jnp.clip(user.astype(jnp.int32), 0, NU - 1)
    iid = jnp.clip(item.astype(jnp.int32), 0, NI - 1)
    uid = jnp.zeros((1, b_pad), jnp.int32).at[0, :B].set(uid)
    iid = jnp.zeros((1, b_pad), jnp.int32).at[0, :B].set(iid)

    # Transposed f32 tables: (F, NU) / (F, NI), whole-array VMEM residents.
    utab_t = user_factors.astype(jnp.float32).T
    itab_t = item_factors.astype(jnp.float32).T

    grid_spec = pltpu.PrefetchScalarGridSpec(
        num_scalar_prefetch=0,
        grid=(n_tiles,),
        in_specs=[
            pl.BlockSpec((1, tile_b), lambda t: (0, t)),            # uid tile
            pl.BlockSpec((1, tile_b), lambda t: (0, t)),            # iid tile
            pl.BlockSpec(memory_space=pltpu.MemorySpace.VMEM),      # user table (resident)
            pl.BlockSpec(memory_space=pltpu.MemorySpace.VMEM),      # item table (resident)
        ],
        out_specs=pl.BlockSpec((1, tile_b), lambda t: (0, t)),
    )

    # Advisory cost hint for XLA's scheduler around the custom call.
    cost = pl.CostEstimate(
        flops=2 * b_pad * F * (NU + NI) + 2 * b_pad * F,
        transcendentals=0,
        bytes_accessed=4 * (F * (NU + NI) + 2 * b_pad + b_pad),
    )

    out = pl.pallas_call(
        mf_kernel,
        out_shape=jax.ShapeDtypeStruct((1, b_pad), jnp.float32),
        grid_spec=grid_spec,
        compiler_params=pltpu.CompilerParams(
            dimension_semantics=("parallel",)),
        cost_estimate=cost,
    )(uid, iid, utab_t, itab_t)

    return out[0, :B]


if __name__ == "__main__":
    num_users = 64
    num_items = 96
    num_factors = 20
    batch = 8

    key = jax.random.PRNGKey(0)
    k_u, k_i, k_uid, k_iid = jax.random.split(key, 4)

    # nn.Embedding default init: N(0, 1).
    user_factors = jax.random.normal(k_u, (num_users, num_factors), jnp.float32)
    item_factors = jax.random.normal(k_i, (num_items, num_factors), jnp.float32)

    user = jax.random.randint(k_uid, (batch,), 0, num_users, jnp.int32)
    item = jax.random.randint(k_iid, (batch,), 0, num_items, jnp.int32)

    out = matrix_factorization_forward(user, item, user_factors, item_factors)
    out = jax.block_until_ready(out)

    # Pure-JAX reference (same semantics as the PyTorch forward).
    ref = jnp.sum(user_factors[user] * item_factors[item], axis=1)
    assert out.shape == (batch,)
    assert jnp.allclose(out, ref, atol=1e-5, rtol=1e-5)

    print("KERNEL_OK")
</pallas_src>

<mosaic_0001>
module attributes {stable_mosaic.version = 11 : i64} {
  func.func @mf_kernel(%arg0: i32, %arg1: memref<1x128xi32, #tpu.memory_space<vmem>>, %arg2: memref<1x128xi32, #tpu.memory_space<vmem>>, %arg3: memref<20x64xf32, #tpu.memory_space<vmem>>, %arg4: memref<20x96xf32, #tpu.memory_space<vmem>>, %arg5: memref<1x128xf32, #tpu.memory_space<vmem>>) attributes {dimension_semantics = [#tpu.dimension_semantics<parallel>], iteration_bounds = array<i64: 1>, scalar_prefetch = 0 : i64, scratch_operands = 0 : i64, tpu.core_type = #tpu.core_type<tc>, window_params = [{transform_indices = @transform_0, window_bounds = array<i64: 1, 128>}, {transform_indices = @transform_1, window_bounds = array<i64: 1, 128>}, {pipeline_mode = #tpu.pipeline_mode<synchronous>, transform_indices = @transform_2, window_bounds = array<i64: 20, 64>}, {pipeline_mode = #tpu.pipeline_mode<synchronous>, transform_indices = @transform_3, window_bounds = array<i64: 20, 96>}, {transform_indices = @transform_4, window_bounds = array<i64: 1, 128>}]} {
    %c0 = arith.constant 0 : index
    %c0_0 = arith.constant 0 : index
    %0 = vector.load %arg1[%c0, %c0_0] : memref<1x128xi32, #tpu.memory_space<vmem>>, vector<1x128xi32>
    %c0_1 = arith.constant 0 : index
    %c0_2 = arith.constant 0 : index
    %1 = vector.load %arg2[%c0_1, %c0_2] : memref<1x128xi32, #tpu.memory_space<vmem>>, vector<1x128xi32>
    %2 = tpu.iota {dimensions = array<i32: 0>} : vector<64x128xi32>
    %3 = tpu.iota {dimensions = array<i32: 0>} : vector<96x128xi32>
    %4 = vector.broadcast %0 : vector<1x128xi32> to vector<64x128xi32>
    %5 = arith.cmpi eq, %2, %4 : vector<64x128xi32>
    %6 = arith.extui %5 : vector<64x128xi1> to vector<64x128xi32>
    %7 = arith.sitofp %6 : vector<64x128xi32> to vector<64x128xf32>
    %8 = vector.broadcast %1 : vector<1x128xi32> to vector<96x128xi32>
    %9 = arith.cmpi eq, %3, %8 : vector<96x128xi32>
    %10 = arith.extui %9 : vector<96x128xi1> to vector<96x128xi32>
    %11 = arith.sitofp %10 : vector<96x128xi32> to vector<96x128xf32>
    %c0_3 = arith.constant 0 : index
    %c0_4 = arith.constant 0 : index
    %12 = vector.load %arg3[%c0_3, %c0_4] : memref<20x64xf32, #tpu.memory_space<vmem>>, vector<20x64xf32>
    %cst = arith.constant dense<0.000000e+00> : vector<20x128xf32>
    %13 = tpu.matmul %12, %7, %cst {dimension_numbers = #tpu.dot_dimension_numbers<[1], [0], [0], [1], [0, 0, 1, 1], [], []>} : vector<20x64xf32>, vector<64x128xf32>, vector<20x128xf32> -> vector<20x128xf32>
    %c0_5 = arith.constant 0 : index
    %c0_6 = arith.constant 0 : index
    %14 = vector.load %arg4[%c0_5, %c0_6] : memref<20x96xf32, #tpu.memory_space<vmem>>, vector<20x96xf32>
    %cst_7 = arith.constant dense<0.000000e+00> : vector<20x128xf32>
    %15 = tpu.matmul %14, %11, %cst_7 {dimension_numbers = #tpu.dot_dimension_numbers<[1], [0], [0], [1], [0, 0, 1, 1], [], []>} : vector<20x96xf32>, vector<96x128xf32>, vector<20x128xf32> -> vector<20x128xf32>
    %16 = arith.mulf %13, %15 : vector<20x128xf32>
    %cst_8 = arith.constant dense<0.000000e+00> : vector<128xf32>
    %17 = vector.multi_reduction <add>, %16, %cst_8 [0] : vector<20x128xf32> to vector<128xf32>
    %18 = vector.shape_cast %17 : vector<128xf32> to vector<1x128xf32>
    %c0_9 = arith.constant 0 : index
    %c0_10 = arith.constant 0 : index
    %19 = vector.load %arg5[%c0_9, %c0_10] : memref<1x128xf32, #tpu.memory_space<vmem>>, vector<1x128xf32>
    tpu.vector_store %arg5[%c0_9, %c0_10], %18 {strides = array<i32>} : memref<1x128xf32, #tpu.memory_space<vmem>>, vector<1x128xf32>,
    return
  }
  func.func @transform_0(%arg0: i32) -> (i32, i32) {
    %c0_i32 = arith.constant 0 : i32
    %c0_i32_0 = arith.constant 0 : i32
    return %c0_i32, %arg0 : i32, i32
  }
  func.func @transform_1(%arg0: i32) -> (i32, i32) {
    %c0_i32 = arith.constant 0 : i32
    %c0_i32_0 = arith.constant 0 : i32
    return %c0_i32, %arg0 : i32, i32
  }
  func.func @transform_2(%arg0: i32) -> (i32, i32) {
    %c0_i32 = arith.constant 0 : i32
    %c0_i32_0 = arith.constant 0 : i32
    %c0_i32_1 = arith.constant 0 : i32
    return %c0_i32, %c0_i32_0 : i32, i32
  }
  func.func @transform_3(%arg0: i32) -> (i32, i32) {
    %c0_i32 = arith.constant 0 : i32
    %c0_i32_0 = arith.constant 0 : i32
    %c0_i32_1 = arith.constant 0 : i32
    return %c0_i32, %c0_i32_0 : i32, i32
  }
  func.func @transform_4(%arg0: i32) -> (i32, i32) {
    %c0_i32 = arith.constant 0 : i32
    %c0_i32_0 = arith.constant 0 : i32
    return %c0_i32, %arg0 : i32, i32
  }
}

</mosaic_0001>

<llo_original>
// kernel: tpu_custom_call.1
$region0: #{tpu_custom_call.1}
  #allocation0 [shape = 'u32[]', space=smem, size = 0x4, offset = 0x4, fixed_abs, tag = 'smem constant byte address 0x4 - core index']
  #allocation1 [shape = 'u32[144,128]{1,0:T(1,128)}', space=vmem, size = 0x12000, scoped, tag = 'internal scratch']
  %s0 = inlined_call_operand.hbm [shape: s32[1,128], index: 0, kind: input, shape index: {}]
  %s1 = inlined_call_operand.vmem [shape: s32[1,128], index: 1, kind: input, shape index: {}]
  %s2 = inlined_call_operand.hbm [shape: f32[20,64], index: 2, kind: input, shape index: {}]
  %s3 = inlined_call_operand.hbm [shape: f32[20,96], index: 3, kind: input, shape index: {}]
  %s4 = inlined_call_operand.hbm [shape: f32[1,128], index: 4, kind: output, shape index: {}]
  %s5 = sld [smem:[#allocation0]]
  $region38: #{tpu_custom_call.1} parent=0
    _
  %s7 = ssub.s32 1, %s5
  %s8 = scalar_select 0, %s7, %s5
  $region1: #{tpu_custom_call.1} parent=0
    #allocation2 [shape = 'u8[512]{0}', space=vmem, size = 0x400, scoped, tag = 'input window, operand 0, single buffered']
    #allocation3 [shape = 's32[1]{0}', space=sflag, size = 0x4, scoped, tag = 'scoped memory for tpu_custom_call.1']
    #allocation4 [shape = 's32[1]{0}', space=sflag, size = 0x4, scoped, tag = 'scoped memory for tpu_custom_call.1']
    #allocation5 [shape = 'u8[12288]{0}', space=vmem, size = 0x3000, scoped, tag = 'input window, operand 2, single buffered']
    #allocation6 [shape = 's32[1]{0}', space=sflag, size = 0x4, scoped, tag = 'scoped memory for tpu_custom_call.1']
    #allocation7 [shape = 'u8[12288]{0}', space=vmem, size = 0x3000, scoped, tag = 'input window, operand 3, single buffered']
    #allocation8 [shape = 'u8[512]{0}', space=vmem, size = 0x400, scoped, tag = 'output window, operand 0, single buffered']
    %9 = vsyncpa [#allocation3], 0
    %10 = vsyncpa [#allocation6], 0
    %11 = vsyncpa [#allocation4], 0
    // Predicated region
    $region2: #{tpu_custom_call.1} parent=1 // pred_check
      _
    $region3: #{tpu_custom_call.1} parent=1 // pred_check_branch
      %13 = sbr.rel (0) target = $region5
    $region4: #{tpu_custom_call.1} parent=1 // pred_region
      %s15 = ssub.s32 16, 16
      %16 = vsyncadd [#allocation3], %s15
      %s18 = sshll.u32 [#allocation2], 4
      %s19 = int_to_ptr.vmem [resolvable:$true] %s18
      %21 = dma.hbm_to_vmem [thread:$0]  %s0, 16, %s19, [#allocation3]
    $region5: #{tpu_custom_call.1} parent=1 // pred_fallthru
      _
    // Predicated region
    $region6: #{tpu_custom_call.1} parent=1 // pred_check
      _
    $region7: #{tpu_custom_call.1} parent=1 // pred_check_branch
      %23 = sbr.rel (0) target = $region9
    $region8: #{tpu_custom_call.1} parent=1 // pred_region
      _
    $region9: #{tpu_custom_call.1} parent=1 // pred_fallthru
      _
    // Predicated region
    $region10: #{tpu_custom_call.1} parent=1 // pred_check
      _
    $region11: #{tpu_custom_call.1} parent=1 // pred_check_branch
      %25 = sbr.rel (0) target = $region13
    $region12: #{tpu_custom_call.1} parent=1 // pred_region
      %s27 = ssub.s32 384, 384
      %28 = vsyncadd [#allocation6], %s27
      %s29 = sshll.u32 [#allocation5], 4
      %s30 = int_to_ptr.vmem [resolvable:$true] %s29
      %35 = dma.hbm_to_vmem [thread:$0]  %s2, 384, %s30, [#allocation6], 128, 128, 8
    $region13: #{tpu_custom_call.1} parent=1 // pred_fallthru
      _
    // Predicated region
    $region14: #{tpu_custom_call.1} parent=1 // pred_check
      _
    $region15: #{tpu_custom_call.1} parent=1 // pred_check_branch
      %37 = sbr.rel (0) target = $region17
    $region16: #{tpu_custom_call.1} parent=1 // pred_region
      %s39 = ssub.s32 384, 384
      %40 = vsyncadd [#allocation6], %s39
      %s41 = sshll.u32 [#allocation7], 4
      %s42 = int_to_ptr.vmem [resolvable:$true] %s41
      %47 = dma.hbm_to_vmem [thread:$0]  %s3, 384, %s42, [#allocation6], 128, 128, 8
    $region17: #{tpu_custom_call.1} parent=1 // pred_fallthru
      _
    // Predicated region
    $region18: #{tpu_custom_call.1} parent=1 // pred_check
      _
    $region19: #{tpu_custom_call.1} parent=1 // pred_check_branch
      %49 = sbr.rel (0) target = $region21
    $region20: #{tpu_custom_call.1} parent=1 // pred_region
      %50 = dma.done [#allocation3], 16
    $region21: #{tpu_custom_call.1} parent=1 // pred_fallthru
      _
    // Predicated region
    $region22: #{tpu_custom_call.1} parent=1 // pred_check
      _
    $region23: #{tpu_custom_call.1} parent=1 // pred_check_branch
      %52 = sbr.rel (0) target = $region25
    $region24: #{tpu_custom_call.1} parent=1 // pred_region
      %53 = dma.done [#allocation6], 384
    $region25: #{tpu_custom_call.1} parent=1 // pred_fallthru
      _
    // Predicated region
    $region26: #{tpu_custom_call.1} parent=1 // pred_check
      _
    $region27: #{tpu_custom_call.1} parent=1 // pred_check_branch
      %55 = sbr.rel (0) target = $region29
    $region28: #{tpu_custom_call.1} parent=1 // pred_region
      %56 = dma.done [#allocation6], 384
    $region29: #{tpu_custom_call.1} parent=1 // pred_fallthru
      _
    %v57 = vld [vmem:[#allocation2] sm:$0x1]
    %v58 = vld [vmem:[%s1] sm:$0x1]
    %v59 = vlaneseq
    %v60 = vshrl.u32 %v59, 7
    %v61 = vadd.s32 %v60, 8
    %v62 = vadd.s32 %v60, 16
    %v63 = vadd.s32 %v60, 24
    %v64 = vadd.s32 %v60, 32
    %v65 = vadd.s32 %v60, 40
    %v66 = vadd.s32 %v60, 48
    %v67 = vadd.s32 %v60, 56
    %v68 = vadd.s32 %v60, 64
    %v69 = vadd.s32 %v60, 72
    %v70 = vadd.s32 %v60, 80
    %v71 = vadd.s32 %v60, 88
    %v72 = vlaneseq
    %v73 = vshrl.u32 %v72, 7
    %v74 = vsub.s32 0, %v73
    %v75 = vrot.slane %v57, %v74
    %vm76 = vcmp.eq.s32.totalorder %v60, %v75
    %vm77 = vcmp.eq.s32.totalorder %v61, %v75
    %vm78 = vcmp.eq.s32.totalorder %v62, %v75
    %vm79 = vcmp.eq.s32.totalorder %v63, %v75
    %vm80 = vcmp.eq.s32.totalorder %v64, %v75
    %vm81 = vcmp.eq.s32.totalorder %v65, %v75
    %vm82 = vcmp.eq.s32.totalorder %v66, %v75
    %vm83 = vcmp.eq.s32.totalorder %v67, %v75
    %v84 = vsel %vm76, 1, 0
    %v85 = vsel %vm77, 1, 0
    %v86 = vsel %vm78, 1, 0
    %v87 = vsel %vm79, 1, 0
    %v88 = vsel %vm80, 1, 0
    %v89 = vsel %vm81, 1, 0
    %v90 = vsel %vm82, 1, 0
    %v91 = vsel %vm83, 1, 0
    %v92 = vcvt.s32.f32 %v84
    %v93 = vcvt.s32.f32 %v85
    %v94 = vcvt.s32.f32 %v86
    %v95 = vcvt.s32.f32 %v87
    %v96 = vcvt.s32.f32 %v88
    %v97 = vcvt.s32.f32 %v89
    %v98 = vcvt.s32.f32 %v90
    %v99 = vcvt.s32.f32 %v91
    %v100 = vlaneseq
    %v101 = vshrl.u32 %v100, 7
    %v102 = vsub.s32 0, %v101
    %v103 = vrot.slane %v58, %v102
    %vm104 = vcmp.eq.s32.totalorder %v60, %v103
    %vm105 = vcmp.eq.s32.totalorder %v61, %v103
    %vm106 = vcmp.eq.s32.totalorder %v62, %v103
    %vm107 = vcmp.eq.s32.totalorder %v63, %v103
    %vm108 = vcmp.eq.s32.totalorder %v64, %v103
    %vm109 = vcmp.eq.s32.totalorder %v65, %v103
    %vm110 = vcmp.eq.s32.totalorder %v66, %v103
    %vm111 = vcmp.eq.s32.totalorder %v67, %v103
    %vm112 = vcmp.eq.s32.totalorder %v68, %v103
    %vm113 = vcmp.eq.s32.totalorder %v69, %v103
    %vm114 = vcmp.eq.s32.totalorder %v70, %v103
    %vm115 = vcmp.eq.s32.totalorder %v71, %v103
    %v116 = vsel %vm104, 1, 0
    %v117 = vsel %vm105, 1, 0
    %v118 = vsel %vm106, 1, 0
    %v119 = vsel %vm107, 1, 0
    %v120 = vsel %vm108, 1, 0
    %v121 = vsel %vm109, 1, 0
    %v122 = vsel %vm110, 1, 0
    %v123 = vsel %vm111, 1, 0
    %v124 = vsel %vm112, 1, 0
    %v125 = vsel %vm113, 1, 0
    %v126 = vsel %vm114, 1, 0
    %v127 = vsel %vm115, 1, 0
    %v128 = vcvt.s32.f32 %v116
    %v129 = vcvt.s32.f32 %v117
    %v130 = vcvt.s32.f32 %v118
    %v131 = vcvt.s32.f32 %v119
    %v132 = vcvt.s32.f32 %v120
    %v133 = vcvt.s32.f32 %v121
    %v134 = vcvt.s32.f32 %v122
    %v135 = vcvt.s32.f32 %v123
    %v136 = vcvt.s32.f32 %v124
    %v137 = vcvt.s32.f32 %v125
    %v138 = vcvt.s32.f32 %v126
    %v139 = vcvt.s32.f32 %v127
    %v140 = vld [vmem:[#allocation5] sm:$0xff]
    %v141 = vld [vmem:[#allocation5 + $0x8] sm:$0xff]
    %v142 = vld [vmem:[#allocation5 + $0x10] sm:$0xf]
    %vm143 = vcmask 523264
    %v145 = vsel %vm143, %v140, 0
    %v148 = vsel %vm143, %v141, 0
    %v151 = vsel %vm143, %v142, 0
    %153 = vmatprep.subr.mxu0 0.0
    %154 = vmatpush1.msra.mxu0 %v92
    %155 = vmatprep.subr.mxu0 0.0
    %156 = vmatpush1.msra.mxu0 %v93
    %157 = vmatprep.subr.mxu0 0.0
    %158 = vmatpush1.msra.mxu0 %v94
    %159 = vmatprep.subr.mxu0 0.0
    %160 = vmatpush1.msra.mxu0 %v95
    %161 = vmatprep.subr.mxu0 0.0
    %162 = vmatpush1.msra.mxu0 %v96
    %163 = vmatprep.subr.mxu0 0.0
    %164 = vmatpush1.msra.mxu0 %v97
    %165 = vmatprep.subr.mxu0 0.0
    %166 = vmatpush1.msra.mxu0 %v98
    %167 = vmatprep.subr.mxu0 0.0
    %168 = vmatpush1.msra.mxu0 %v99
    %169 = vmatprep.subr.mxu0 0.0
    %170 = vmatpush1.msra.mxu0 0.0
    %171 = vmatprep.subr.mxu0 0.0
    %172 = vmatpush1.msra.mxu0 0.0
    %173 = vmatprep.subr.mxu0 0.0
    %174 = vmatpush1.msra.mxu0 0.0
    %175 = vmatprep.subr.mxu0 0.0
    %176 = vmatpush1.msra.mxu0 0.0
    %177 = vmatprep.subr.mxu0 0.0
    %178 = vmatpush1.msra.mxu0 0.0
    %179 = vmatprep.subr.mxu0 0.0
    %180 = vmatpush1.msra.mxu0 0.0
    %181 = vmatprep.subr.mxu0 0.0
    %182 = vmatpush1.msra.mxu0 0.0
    %183 = vmatprep.subr.mxu0 0.0
    %184 = vmatpush1.msra.mxu0 0.0
    %185 = vmatprep.subr.mxu0 0.0
    %186 = vmatpush1.msra.mxu0 0.0
    %187 = vmatprep.subr.mxu0 0.0
    %188 = vmatpush1.msra.mxu0 0.0
    %189 = vmatprep.subr.mxu0 0.0
    %190 = vmatpush1.msra.mxu0 0.0
    %191 = vmatprep.subr.mxu0 0.0
    %192 = vmatpush1.msra.mxu0 0.0
    %193 = vmatprep.subr.mxu0 0.0
    %194 = vmatpush1.msra.mxu0 0.0
    %195 = vmatprep.subr.mxu0 0.0
    %196 = vmatpush1.msra.mxu0 0.0
    %197 = vmatprep.subr.mxu0 0.0
    %198 = vmatpush1.msra.mxu0 0.0
    %199 = vmatprep.subr.mxu0 0.0
    %200 = vmatpush1.msra.mxu0 0.0
    %201 = vmatprep.subr.mxu0 0.0
    %202 = vmatpush1.msra.mxu0 0.0
    %203 = vmatprep.subr.mxu0 0.0
    %204 = vmatpush1.msra.mxu0 0.0
    %205 = vmatprep.subr.mxu0 0.0
    %206 = vmatpush1.msra.mxu0 0.0
    %207 = vmatprep.subr.mxu0 0.0
    %208 = vmatpush1.msra.mxu0 0.0
    %209 = vmatprep.subr.mxu0 0.0
    %210 = vmatpush1.msra.mxu0 0.0
    %211 = vmatprep.subr.mxu0 0.0
    %212 = vmatpush1.msra.mxu0 0.0
    %213 = vmatprep.subr.mxu0 0.0
    %214 = vmatpush1.msra.mxu0 0.0
    %215 = vmatprep.subr.mxu0 0.0
    %216 = vmatpush1.msra.mxu0 0.0
    %217 = vmatprep.mubr.f32.mxu0 0.0
    %218 = vmatmul.mubr.f32.gmra.mrb[0].mxu0 %v145
    %v219 = vpop.f32.mrb[0].mxu0
    %v220 = vadd.f32 0.0, %v219
    %v221 = vpop.f32.mrb[0].mxu0
    %222 = vmatprep.mubr.f32.mxu0 0.0
    %223 = vmatmul.mubr.f32.gmra.mrb[0].mxu0 %v148
    %v224 = vpop.f32.mrb[0].mxu0
    %v225 = vadd.f32 0.0, %v224
    %v226 = vpop.f32.mrb[0].mxu0
    %227 = vmatprep.mubr.f32.mxu0 0.0
    %228 = vmatmul.mubr.f32.gmra.mrb[0].mxu0 %v151
    %v229 = vpop.f32.mrb[0].mxu0
    %v230 = vadd.f32 0.0, %v229
    %v231 = vpop.f32.mrb[0].mxu0
    %232 = vdwg.mxu0
    %v233 = vld [vmem:[#allocation7] sm:$0xff]
    %v234 = vld [vmem:[#allocation7 + $0x8] sm:$0xff]
    %v235 = vld [vmem:[#allocation7 + $0x10] sm:$0xf]
    %vm236 = vcmask 785408
    %v238 = vsel %vm236, %v233, 0
    %v241 = vsel %vm236, %v234, 0
    %v244 = vsel %vm236, %v235, 0
    %246 = vmatprep.subr.mxu0 0.0
    %247 = vmatpush1.msra.mxu0 %v128
    %248 = vmatprep.subr.mxu0 0.0
    %249 = vmatpush1.msra.mxu0 %v129
    %250 = vmatprep.subr.mxu0 0.0
    %251 = vmatpush1.msra.mxu0 %v130
    %252 = vmatprep.subr.mxu0 0.0
    %253 = vmatpush1.msra.mxu0 %v131
    %254 = vmatprep.subr.mxu0 0.0
    %255 = vmatpush1.msra.mxu0 %v132
    %256 = vmatprep.subr.mxu0 0.0
    %257 = vmatpush1.msra.mxu0 %v133
    %258 = vmatprep.subr.mxu0 0.0
    %259 = vmatpush1.msra.mxu0 %v134
    %260 = vmatprep.subr.mxu0 0.0
    %261 = vmatpush1.msra.mxu0 %v135
    %262 = vmatprep.subr.mxu0 0.0
    %263 = vmatpush1.msra.mxu0 %v136
    %264 = vmatprep.subr.mxu0 0.0
    %265 = vmatpush1.msra.mxu0 %v137
    %266 = vmatprep.subr.mxu0 0.0
    %267 = vmatpush1.msra.mxu0 %v138
    %268 = vmatprep.subr.mxu0 0.0
    %269 = vmatpush1.msra.mxu0 %v139
    %270 = vmatprep.subr.mxu0 0.0
    %271 = vmatpush1.msra.mxu0 0.0
    %272 = vmatprep.subr.mxu0 0.0
    %273 = vmatpush1.msra.mxu0 0.0
    %274 = vmatprep.subr.mxu0 0.0
    %275 = vmatpush1.msra.mxu0 0.0
    %276 = vmatprep.subr.mxu0 0.0
    %277 = vmatpush1.msra.mxu0 0.0
    %278 = vmatprep.subr.mxu0 0.0
    %279 = vmatpush1.msra.mxu0 0.0
    %280 = vmatprep.subr.mxu0 0.0
    %281 = vmatpush1.msra.mxu0 0.0
    %282 = vmatprep.subr.mxu0 0.0
    %283 = vmatpush1.msra.mxu0 0.0
    %284 = vmatprep.subr.mxu0 0.0
    %285 = vmatpush1.msra.mxu0 0.0
    %286 = vmatprep.subr.mxu0 0.0
    %287 = vmatpush1.msra.mxu0 0.0
    %288 = vmatprep.subr.mxu0 0.0
    %289 = vmatpush1.msra.mxu0 0.0
    %290 = vmatprep.subr.mxu0 0.0
    %291 = vmatpush1.msra.mxu0 0.0
    %292 = vmatprep.subr.mxu0 0.0
    %293 = vmatpush1.msra.mxu0 0.0
    %294 = vmatprep.subr.mxu0 0.0
    %295 = vmatpush1.msra.mxu0 0.0
    %296 = vmatprep.subr.mxu0 0.0
    %297 = vmatpush1.msra.mxu0 0.0
    %298 = vmatprep.subr.mxu0 0.0
    %299 = vmatpush1.msra.mxu0 0.0
    %300 = vmatprep.subr.mxu0 0.0
    %301 = vmatpush1.msra.mxu0 0.0
    %302 = vmatprep.subr.mxu0 0.0
    %303 = vmatpush1.msra.mxu0 0.0
    %304 = vmatprep.subr.mxu0 0.0
    %305 = vmatpush1.msra.mxu0 0.0
    %306 = vmatprep.subr.mxu0 0.0
    %307 = vmatpush1.msra.mxu0 0.0
    %308 = vmatprep.subr.mxu0 0.0
    %309 = vmatpush1.msra.mxu0 0.0
    %310 = vmatprep.mubr.f32.mxu0 0.0
    %311 = vmatmul.mubr.f32.gmra.mrb[0].mxu0 %v238
    %v312 = vpop.f32.mrb[0].mxu0
    %v313 = vadd.f32 0.0, %v312
    %v314 = vpop.f32.mrb[0].mxu0
    %315 = vmatprep.mubr.f32.mxu0 0.0
    %316 = vmatmul.mubr.f32.gmra.mrb[0].mxu0 %v241
    %v317 = vpop.f32.mrb[0].mxu0
    %v318 = vadd.f32 0.0, %v317
    %v319 = vpop.f32.mrb[0].mxu0
    %320 = vmatprep.mubr.f32.mxu0 0.0
    %321 = vmatmul.mubr.f32.gmra.mrb[0].mxu0 %v244
    %v322 = vpop.f32.mrb[0].mxu0
    %v323 = vadd.f32 0.0, %v322
    %v324 = vpop.f32.mrb[0].mxu0
    %325 = vdwg.mxu0
    %v326 = vmul.f32 %v220, %v313
    %v327 = vmul.f32 %v225, %v318
    %v328 = vmul.f32 %v230, %v323
    %v329 = vadd.f32 %v326, %v327
    %vm330 = vcmask 1043456
    %v331 = vsel %vm330, %v328, 0.0
    %v332 = vadd.f32 %v329, %v331
    %v333 = vrot.slane %v332, 4
    %v334 = vadd.f32 %v332, %v333
    %v335 = vrot.slane %v334, 2
    %v336 = vadd.f32 %v334, %v335
    %v337 = vrot.slane %v336, 1
    %v338 = vadd.f32 %v336, %v337
    %339 = vst [vmem:[#allocation8] sm:$0x1] %v338
    // Predicated region
    $region30: #{tpu_custom_call.1} parent=1 // pred_check
      _
    $region31: #{tpu_custom_call.1} parent=1 // pred_check_branch
      %341 = sbr.rel (0) target = $region33
    $region32: #{tpu_custom_call.1} parent=1 // pred_region
      %s343 = ssub.s32 16, 16
      %344 = vsyncadd [#allocation4], %s343
      %s346 = sshll.u32 [#allocation8], 4
      %s347 = int_to_ptr.vmem [resolvable:$true] %s346
      %349 = dma.vmem_to_hbm [thread:$0]  %s347, 16, %s4, [#allocation4]
    $region33: #{tpu_custom_call.1} parent=1 // pred_fallthru
      _
    // Predicated region
    $region34: #{tpu_custom_call.1} parent=1 // pred_check
      _
    $region35: #{tpu_custom_call.1} parent=1 // pred_check_branch
      %351 = sbr.rel (0) target = $region37
    $region36: #{tpu_custom_call.1} parent=1 // pred_region
      %352 = dma.done [#allocation4], 16
    $region37: #{tpu_custom_call.1} parent=1 // pred_fallthru
      _
    %353 = vsyncpa [#allocation3], 1
    %354 = vsyncpa [#allocation6], 1
    %355 = vsyncpa [#allocation4], 1

</llo_original>
